<compile_context>
chip_gen: v6e
topology: v6e:2x2x1
jax: 0.10.0
libtpu: 0.0.40
codegen_flags: <defaults>
</compile_context>

<pallas_src>
import jax
import jax.numpy as jnp
from jax import lax
from jax.experimental import pallas as pl
from jax.experimental.pallas import tpu as pltpu


# ---------------------------------------------------------------------------
# Matvec path (out_features == 1): VPU multiply + XLU reduce, no MXU.
# ---------------------------------------------------------------------------
def _matvec_kernel(x_ref, w_ref, b_ref, o_ref):
    # x_ref: (tm, K) VMEM | w_ref: (1, K) VMEM | b_ref: (1, 1) SMEM | o_ref: (tm, 1) VMEM
    x = x_ref[...].astype(jnp.float32)              # f32 epilogue math (v5e has no bf16 VPU)
    w = w_ref[...].astype(jnp.float32)
    prod = x * w                                    # VPU, (1, K) broadcasts over rows
    col = jnp.sum(prod, axis=-1, keepdims=True)     # XLU lane-reduce -> (tm, 1) f32
    o_ref[...] = (col + b_ref[0, 0]).astype(o_ref.dtype)


def _linear_matvec(x, weight, bias, *, tm_pref=256):
    B, K = x.shape
    tm = tm_pref if B % tm_pref == 0 else B         # ragged B -> single full-M block
    grid = (pl.cdiv(B, tm),)
    return pl.pallas_call(
        _matvec_kernel,
        out_shape=jax.ShapeDtypeStruct((B, 1), x.dtype),
        grid=grid,
        in_specs=[
            pl.BlockSpec((tm, K), lambda i: (i, 0)),
            pl.BlockSpec((1, K), lambda i: (0, 0)),             # weight row stays resident
            pl.BlockSpec(memory_space=pltpu.MemorySpace.SMEM),  # scalar bias in SMEM
        ],
        out_specs=pl.BlockSpec((tm, 1), lambda i: (i, 0)),
        compiler_params=pltpu.CompilerParams(
            dimension_semantics=("parallel",),       # batch tiles shard across TCs on v7x
            vmem_limit_bytes=32 * 1024 * 1024,
        ),
    )(x, weight, bias.reshape(1, 1))


# ---------------------------------------------------------------------------
# General tiled path (out_features > 1): MXU matmul against W in [out, in] layout.
# ---------------------------------------------------------------------------
def _mxu_kernel(x_ref, w_ref, b_ref, o_ref, acc_ref):
    k = pl.program_id(2)

    @pl.when(k == 0)
    def _():
        acc_ref[...] = jnp.zeros_like(acc_ref)

    # Contract x(tm, tk) with weight(tn, tk) on dim 1 of both: no transposed copy of W.
    acc_ref[...] += lax.dot_general(
        x_ref[...], w_ref[...],
        dimension_numbers=(((1,), (1,)), ((), ())),
        preferred_element_type=jnp.float32,
    )

    @pl.when(k == pl.num_programs(2) - 1)
    def _():
        o_ref[...] = (acc_ref[...] + b_ref[...]).astype(o_ref.dtype)


def _pick_tile(dim, preferred):
    # Exact tiling only; a ragged dim falls back to a single full-extent block,
    # which always satisfies the (8,128) BlockSpec rule.
    return preferred if dim % preferred == 0 else dim


def _linear_mxu(x, weight, bias, *, tm_pref=256, tn_pref=256, tk_pref=512):
    B, K = x.shape
    N, _ = weight.shape
    tm = _pick_tile(B, tm_pref)
    tn = _pick_tile(N, tn_pref)
    tk = _pick_tile(K, tk_pref)
    # VMEM budget (worst aligned case): 2 inputs * 2 bufs * 256*512*4B + acc ~= 2.3 MiB,
    # well under the 32 MiB scoped limit on v7x (64 MiB physical).
    grid = (pl.cdiv(B, tm), pl.cdiv(N, tn), pl.cdiv(K, tk))
    return pl.pallas_call(
        _mxu_kernel,
        out_shape=jax.ShapeDtypeStruct((B, N), x.dtype),
        grid=grid,
        in_specs=[
            pl.BlockSpec((tm, tk), lambda i, j, k: (i, k)),
            pl.BlockSpec((tn, tk), lambda i, j, k: (j, k)),   # W kept in PyTorch [out, in]
            pl.BlockSpec((1, tn), lambda i, j, k: (0, j)),    # bias tile follows output N
        ],
        out_specs=pl.BlockSpec((tm, tn), lambda i, j, k: (i, j)),
        scratch_shapes=[pltpu.VMEM((tm, tn), jnp.float32)],
        compiler_params=pltpu.CompilerParams(
            dimension_semantics=("parallel", "parallel", "arbitrary"),
            vmem_limit_bytes=32 * 1024 * 1024,
        ),
    )(x, weight, bias.reshape(1, N))


def linear_forward(x, weight, bias):
    """y = x @ weight.T + bias, matching torch.nn.Linear.forward.

    x: [B, in_features], weight: [out_features, in_features], bias: [out_features].
    """
    B, K = x.shape
    N, K2 = weight.shape
    assert K == K2 and bias.shape == (N,)
    if N == 1 and K <= 8192:
        return _linear_matvec(x, weight, bias)
    return _linear_mxu(x, weight, bias)


if __name__ == "__main__":
    # Deterministic inputs; shapes implied by LinearRegression(in_features, out_features=1).
    in_features = 32
    out_features = 1
    batch = 8

    key = jax.random.PRNGKey(0)
    kx, kw, kb = jax.random.split(key, 3)

    x = jax.random.normal(kx, (batch, in_features), dtype=jnp.float32)
    # Mimic PyTorch's uniform(-1/sqrt(in), 1/sqrt(in)) init deterministically.
    bound = 1.0 / jnp.sqrt(jnp.float32(in_features))
    weight = jax.random.uniform(kw, (out_features, in_features),
                                dtype=jnp.float32, minval=-bound, maxval=bound)
    bias = jax.random.uniform(kb, (out_features,),
                              dtype=jnp.float32, minval=-bound, maxval=bound)

    # Matvec path (the module's default out_features=1).
    y = linear_forward(x, weight, bias)
    jax.block_until_ready(y)
    y_ref = x @ weight.T + bias
    assert y.shape == (batch, out_features)
    assert jnp.allclose(y, y_ref, atol=1e-5, rtol=1e-5)

    # Also exercise the general tiled MXU path (out_features > 1).
    w2 = jax.random.uniform(kw, (4, in_features),
                            dtype=jnp.float32, minval=-bound, maxval=bound)
    b2 = jax.random.uniform(kb, (4,),
                            dtype=jnp.float32, minval=-bound, maxval=bound)
    y2 = linear_forward(x, w2, b2)
    jax.block_until_ready(y2)
    assert jnp.allclose(y2, x @ w2.T + b2, atol=1e-5, rtol=1e-5)

    print("KERNEL_OK")
</pallas_src>

<mosaic_0001>
module attributes {stable_mosaic.version = 11 : i64} {
  func.func @_matvec_kernel(%arg0: i32, %arg1: memref<8x32xf32, #tpu.memory_space<vmem>>, %arg2: memref<1x32xf32, #tpu.memory_space<vmem>>, %arg3: memref<1x1xf32, #tpu.memory_space<smem>>, %arg4: memref<8x1xf32, #tpu.memory_space<vmem>>) attributes {dimension_semantics = [#tpu.dimension_semantics<parallel>], iteration_bounds = array<i64: 1>, scalar_prefetch = 0 : i64, scratch_operands = 0 : i64, tpu.core_type = #tpu.core_type<tc>, window_params = [{transform_indices = @transform_0, window_bounds = array<i64: 8, 32>}, {pipeline_mode = #tpu.pipeline_mode<synchronous>, transform_indices = @transform_1, window_bounds = array<i64: 1, 32>}, {transform_indices = @transform_2, window_bounds = array<i64: 1, 1>}, {transform_indices = @transform_3, window_bounds = array<i64: 8, 1>}]} {
    %c0 = arith.constant 0 : index
    %c0_0 = arith.constant 0 : index
    %0 = vector.load %arg1[%c0, %c0_0] : memref<8x32xf32, #tpu.memory_space<vmem>>, vector<8x32xf32>
    %c0_1 = arith.constant 0 : index
    %c0_2 = arith.constant 0 : index
    %1 = vector.load %arg2[%c0_1, %c0_2] : memref<1x32xf32, #tpu.memory_space<vmem>>, vector<1x32xf32>
    %2 = vector.broadcast %1 : vector<1x32xf32> to vector<8x32xf32>
    %3 = arith.mulf %0, %2 : vector<8x32xf32>
    %cst = arith.constant dense<0.000000e+00> : vector<8xf32>
    %4 = vector.multi_reduction <add>, %3, %cst [1] : vector<8x32xf32> to vector<8xf32>
    %5 = vector.shape_cast %4 : vector<8xf32> to vector<8x1xf32>
    %c0_3 = arith.constant 0 : index
    %c0_4 = arith.constant 0 : index
    %6 = memref.load %arg3[%c0_3, %c0_4] : memref<1x1xf32, #tpu.memory_space<smem>>
    %7 = vector.broadcast %6 : f32 to vector<8x1xf32>
    %8 = arith.addf %5, %7 : vector<8x1xf32>
    %c0_5 = arith.constant 0 : index
    %c0_6 = arith.constant 0 : index
    %9 = vector.load %arg4[%c0_5, %c0_6] : memref<8x1xf32, #tpu.memory_space<vmem>>, vector<8x1xf32>
    tpu.vector_store %arg4[%c0_5, %c0_6], %8 {strides = array<i32>} : memref<8x1xf32, #tpu.memory_space<vmem>>, vector<8x1xf32>,
    return
  }
  func.func @transform_0(%arg0: i32) -> (i32, i32) {
    %c0_i32 = arith.constant 0 : i32
    %c0_i32_0 = arith.constant 0 : i32
    return %arg0, %c0_i32 : i32, i32
  }
  func.func @transform_1(%arg0: i32) -> (i32, i32) {
    %c0_i32 = arith.constant 0 : i32
    %c0_i32_0 = arith.constant 0 : i32
    %c0_i32_1 = arith.constant 0 : i32
    return %c0_i32, %c0_i32_0 : i32, i32
  }
  func.func @transform_2(%arg0: i32) -> (i32, i32) {
    %c0_i32 = arith.constant 0 : i32
    %c0_i32_0 = arith.constant 0 : i32
    %c0_i32_1 = arith.constant 0 : i32
    return %c0_i32, %c0_i32_0 : i32, i32
  }
  func.func @transform_3(%arg0: i32) -> (i32, i32) {
    %c0_i32 = arith.constant 0 : i32
    %c0_i32_0 = arith.constant 0 : i32
    return %arg0, %c0_i32 : i32, i32
  }
}

</mosaic_0001>

<llo_original>
// kernel: tpu_custom_call.1
$region0: #{tpu_custom_call.1}
  #allocation0 [shape = 'u32[]', space=smem, size = 0x4, offset = 0x4, fixed_abs, tag = 'smem constant byte address 0x4 - core index']
  #allocation1 [shape = 'u32[144,128]{1,0:T(1,128)}', space=vmem, size = 0x12000, scoped, tag = 'internal scratch']
  #allocation2 [shape = 'f32[1,1]{1,0:T(1,128)S(6)}', space=smem, size = 0x200, scoped, tag = 'scoped memory for tpu_custom_call.1']
  %s0 = inlined_call_operand.hbm [shape: f32[8,32], index: 0, kind: input, shape index: {}]
  %s1 = inlined_call_operand.vmem [shape: f32[1,32], index: 1, kind: input, shape index: {}]
  %s2 = inlined_call_operand.<no memory space> [shape: f32[1,1], index: 2, kind: input, shape index: {}]
  %s3 = inlined_call_operand.vmem [shape: f32[8,1], index: 3, kind: output, shape index: {}]
  %s4 = sld [smem:[#allocation0]]
  $region26: #{tpu_custom_call.1} parent=0
    _
  %s6 = ssub.s32 1, %s4
  %s7 = scalar_select 0, %s6, %s4
  %8 = sst [smem:[#allocation2]] %s2
  $region1: #{tpu_custom_call.1} parent=0
    #allocation3 [shape = 'u8[4096]{0}', space=vmem, size = 0x1000, scoped, tag = 'input window, operand 0, single buffered']
    #allocation4 [shape = 's32[1]{0}', space=sflag, size = 0x4, scoped, tag = 'scoped memory for tpu_custom_call.1']
    %9 = vsyncpa [#allocation4], 0
    // Predicated region
    $region2: #{tpu_custom_call.1} parent=1 // pred_check
      _
    $region3: #{tpu_custom_call.1} parent=1 // pred_check_branch
      %11 = sbr.rel (0) target = $region5
    $region4: #{tpu_custom_call.1} parent=1 // pred_region
      %s13 = ssub.s32 128, 128
      %14 = vsyncadd [#allocation4], %s13
      %s16 = sshll.u32 [#allocation3], 4
      %s17 = int_to_ptr.vmem [resolvable:$true] %s16
      %19 = dma.hbm_to_vmem [thread:$0]  %s0, 128, %s17, [#allocation4]
    $region5: #{tpu_custom_call.1} parent=1 // pred_fallthru
      _
    // Predicated region
    $region6: #{tpu_custom_call.1} parent=1 // pred_check
      _
    $region7: #{tpu_custom_call.1} parent=1 // pred_check_branch
      %21 = sbr.rel (0) target = $region9
    $region8: #{tpu_custom_call.1} parent=1 // pred_region
      _
    $region9: #{tpu_custom_call.1} parent=1 // pred_fallthru
      _
    // Predicated region
    $region10: #{tpu_custom_call.1} parent=1 // pred_check
      _
    $region11: #{tpu_custom_call.1} parent=1 // pred_check_branch
      %23 = sbr.rel (0) target = $region13
    $region12: #{tpu_custom_call.1} parent=1 // pred_region
      _
    $region13: #{tpu_custom_call.1} parent=1 // pred_fallthru
      _
    // Predicated region
    $region14: #{tpu_custom_call.1} parent=1 // pred_check
      _
    $region15: #{tpu_custom_call.1} parent=1 // pred_check_branch
      %25 = sbr.rel (0) target = $region17
    $region16: #{tpu_custom_call.1} parent=1 // pred_region
      %26 = dma.done [#allocation4], 128
    $region17: #{tpu_custom_call.1} parent=1 // pred_fallthru
      _
    %v27 = vld [vmem:[#allocation3] sm:$0xff]
    %v28 = vld [vmem:[%s1] sm:$0x1]
    %v30 = vlaneseq
    %v31 = vshrl.u32 %v30, 7
    %v32 = vsub.s32 0, %v31
    %v33 = vrot.slane %v28, %v32
    %v35 = vmul.f32 %v27, %v33
    %vm36 = vcmask 261120
    %v37 = vsel %vm36, %v35, 0.0
    %38 = vadd.xlane.f32.xlu0 %v37
    %v39 = vpop.xlane.xlu0 %38
    %s40 = sld [smem:[#allocation2]]
    %v41 = vstv %s40
    %v42 = vadd.f32 %v39, %v41
    %vm43 = vcmask 7168
    %44 = vst.msk [vmem:[%s3] sm:$0xff] %vm43, %v42
    // Predicated region
    $region18: #{tpu_custom_call.1} parent=1 // pred_check
      _
    $region19: #{tpu_custom_call.1} parent=1 // pred_check_branch
      %46 = sbr.rel (0) target = $region21
    $region20: #{tpu_custom_call.1} parent=1 // pred_region
      _
    $region21: #{tpu_custom_call.1} parent=1 // pred_fallthru
      _
    // Predicated region
    $region22: #{tpu_custom_call.1} parent=1 // pred_check
      _
    $region23: #{tpu_custom_call.1} parent=1 // pred_check_branch
      %48 = sbr.rel (0) target = $region25
    $region24: #{tpu_custom_call.1} parent=1 // pred_region
      _
    $region25: #{tpu_custom_call.1} parent=1 // pred_fallthru
      _
    %49 = vsyncpa [#allocation4], 1

</llo_original>
